<compile_context>
chip_gen: v5e
topology: v5e:2x2
jax: 0.10.0
libtpu: 0.0.40
codegen_flags: <defaults>
</compile_context>

<pallas_src>
import functools

import jax
import jax.numpy as jnp
from jax import lax
from jax.experimental import pallas as pl
from jax.experimental.pallas import tpu as pltpu

_LANES = 128
_MAX_BLOCK_ROWS = 4096     # (4096, 128) f32 = 2 MiB per input per pipeline buffer
_NUM_PARTITIONS = 2        # leading grid axis; sharded across TCs on megacore parts


def _round_up(x, m):
    return (x + m - 1) // m * m


def _dice_partial_kernel(x_ref, t_ref, out_xt_ref, out_s_ref, acc_xt, acc_s,
                         *, block_rows, valid_rows, needs_mask):
    k = pl.program_id(1)

    @pl.when(k == 0)
    def _init():
        acc_xt[...] = jnp.zeros_like(acc_xt)
        acc_s[...] = jnp.zeros_like(acc_s)

    x = x_ref[...].astype(jnp.float32)
    t = t_ref[...].astype(jnp.float32)

    if needs_mask:
        # Logical (unclamped) block id -> first row this block *should* cover.
        blk = pl.program_id(0) * pl.num_programs(1) + k
        row0 = blk * block_rows
        row_ids = row0 + lax.broadcasted_iota(jnp.int32, x.shape, 0)
        keep = row_ids < valid_rows
        x = jnp.where(keep, x, 0.0)
        t = jnp.where(keep, t, 0.0)

    # Fused accumulators: per-lane partial sums (sublane reduce per block).
    acc_xt[...] += jnp.sum(x * t, axis=0, keepdims=True)
    acc_s[...] += jnp.sum(x + t, axis=0, keepdims=True)

    @pl.when(k == pl.num_programs(1) - 1)
    def _emit():
        out_xt_ref[0] = acc_xt[...]
        out_s_ref[0] = acc_s[...]


def dice_loss(inputs, targets, smooth=1.0, *, max_block_rows=_MAX_BLOCK_ROWS):
    """Pallas TPU implementation of DiceLoss.forward. Returns an f32 scalar."""
    assert inputs.shape == targets.shape, "inputs/targets must match in shape"
    assert max_block_rows >= 8 and max_block_rows % 8 == 0

    x = inputs.reshape(-1)
    t = targets.reshape(-1)
    n = x.shape[0]

    # Pad only when the flat size is not lane-aligned (zero padding leaves all
    # three sums unchanged). Typical segmentation sizes are already multiples
    # of 128, so this costs nothing in the common case.
    n_pad = _round_up(n, _LANES)
    if n_pad != n:
        x = jnp.pad(x, (0, n_pad - n))
        t = jnp.pad(t, (0, n_pad - n))

    rows = n_pad // _LANES
    x2d = x.reshape(rows, _LANES)
    t2d = t.reshape(rows, _LANES)

    # Block over rows: either the full row count (single block, any size) or a
    # multiple of 8 (BlockSpec sublane constraint).
    block_rows = rows if rows <= max_block_rows else max_block_rows
    nblocks = -(-rows // block_rows)
    P = min(_NUM_PARTITIONS, nblocks)       # parallel partitions (megacore)
    K = -(-nblocks // P)                    # sequential steps per partition

    if P * K == nblocks:
        def in_map(p, k):
            return (p * K + k, 0)
    else:
        last_blk = nblocks - 1

        def in_map(p, k):                   # clamp; extra blocks masked to 0
            return (jnp.minimum(p * K + k, last_blk), 0)

    needs_mask = (P * K * block_rows != rows)

    kernel = functools.partial(
        _dice_partial_kernel,
        block_rows=block_rows, valid_rows=rows, needs_mask=needs_mask)

    part_xt, part_s = pl.pallas_call(
        kernel,
        out_shape=(jax.ShapeDtypeStruct((P, 1, _LANES), jnp.float32),
                   jax.ShapeDtypeStruct((P, 1, _LANES), jnp.float32)),
        grid_spec=pltpu.PrefetchScalarGridSpec(
            num_scalar_prefetch=0,
            grid=(P, K),
            in_specs=[
                pl.BlockSpec((block_rows, _LANES), in_map),
                pl.BlockSpec((block_rows, _LANES), in_map),
            ],
            out_specs=[
                pl.BlockSpec((1, 1, _LANES), lambda p, k: (p, 0, 0)),
                pl.BlockSpec((1, 1, _LANES), lambda p, k: (p, 0, 0)),
            ],
            scratch_shapes=[
                pltpu.VMEM((1, _LANES), jnp.float32),
                pltpu.VMEM((1, _LANES), jnp.float32),
            ],
        ),
        compiler_params=pltpu.CompilerParams(
            dimension_semantics=("parallel", "arbitrary"),
            vmem_limit_bytes=32 * 1024 * 1024,
        ),
    )(x2d, t2d)

    # Tiny finalize in plain JAX on the lane-dense per-partition partials.
    intersection = jnp.sum(part_xt)
    total = jnp.sum(part_s)                 # == sum(inputs) + sum(targets)
    dice = (2.0 * intersection + smooth) / (total + smooth)
    return (1.0 - dice).astype(jnp.float32)


def _dice_loss_ref(inputs, targets, smooth=1.0):
    x = inputs.reshape(-1).astype(jnp.float32)
    t = targets.reshape(-1).astype(jnp.float32)
    inter = jnp.sum(x * t)
    dice = (2.0 * inter + smooth) / (jnp.sum(x) + jnp.sum(t) + smooth)
    return 1.0 - dice


if __name__ == "__main__":
    key = jax.random.PRNGKey(0)
    k1, k2, k3, k4 = jax.random.split(key, 4)

    # Typical segmentation-style inputs: NCHW probabilities and binary masks.
    inputs = jax.nn.sigmoid(jax.random.normal(k1, (2, 4, 16, 16), jnp.float32))
    targets = (jax.random.uniform(k2, (2, 4, 16, 16)) > 0.5).astype(jnp.float32)

    loss = jax.block_until_ready(dice_loss(inputs, targets, smooth=1.0))
    ref = _dice_loss_ref(inputs, targets, smooth=1.0)
    assert jnp.allclose(loss, ref, rtol=1e-5, atol=1e-5), (loss, ref)

    # Also exercise the multi-block / parallel-partition / masked-tail path at
    # a tiny size (small block cap), streaming a native-bf16 input.
    inputs2 = jax.nn.sigmoid(
        jax.random.normal(k3, (2, 4, 16, 20), jnp.float32)).astype(jnp.bfloat16)
    targets2 = (jax.random.uniform(k4, (2, 4, 16, 20)) > 0.5).astype(jnp.float32)
    loss2 = jax.block_until_ready(
        dice_loss(inputs2, targets2, smooth=1.0, max_block_rows=8))
    ref2 = _dice_loss_ref(inputs2, targets2, smooth=1.0)
    assert jnp.allclose(loss2, ref2, rtol=1e-5, atol=1e-5), (loss2, ref2)

    print("KERNEL_OK")
</pallas_src>

<mosaic_0001>
module attributes {stable_mosaic.version = 11 : i64} {
  func.func @_dice_partial_kernel(%arg0: i32, %arg1: i32, %arg2: memref<16x128xf32, #tpu.memory_space<vmem>>, %arg3: memref<16x128xf32, #tpu.memory_space<vmem>>, %arg4: memref<1x1x128xf32, #tpu.memory_space<vmem>>, %arg5: memref<1x1x128xf32, #tpu.memory_space<vmem>>, %arg6: memref<1x128xf32, #tpu.memory_space<vmem>>, %arg7: memref<1x128xf32, #tpu.memory_space<vmem>>) attributes {dimension_semantics = [#tpu.dimension_semantics<parallel>, #tpu.dimension_semantics<arbitrary>], iteration_bounds = array<i64: 1, 1>, scalar_prefetch = 0 : i64, scratch_operands = 2 : i64, tpu.core_type = #tpu.core_type<tc>, window_params = [{transform_indices = @transform_0, window_bounds = array<i64: 16, 128>}, {transform_indices = @transform_1, window_bounds = array<i64: 16, 128>}, {transform_indices = @transform_2, window_bounds = array<i64: 1, 1, 128>}, {transform_indices = @transform_3, window_bounds = array<i64: 1, 1, 128>}]} {
    %c0_i32 = arith.constant 0 : i32
    %0 = arith.cmpi eq, %arg1, %c0_i32 : i32
    %1 = arith.extui %0 : i1 to i32
    %c0_i32_0 = arith.constant 0 : i32
    %2 = arith.cmpi ne, %1, %c0_i32_0 : i32
    scf.if %2 {
      %cst_15 = arith.constant 0.000000e+00 : f32
      %20 = vector.broadcast %cst_15 : f32 to vector<1x128xf32>
      %c0_16 = arith.constant 0 : index
      %c0_17 = arith.constant 0 : index
      %21 = vector.load %arg6[%c0_16, %c0_17] : memref<1x128xf32, #tpu.memory_space<vmem>>, vector<1x128xf32>
      tpu.vector_store %arg6[%c0_16, %c0_17], %20 {strides = array<i32>} : memref<1x128xf32, #tpu.memory_space<vmem>>, vector<1x128xf32>,
      %cst_18 = arith.constant 0.000000e+00 : f32
      %22 = vector.broadcast %cst_18 : f32 to vector<1x128xf32>
      %c0_19 = arith.constant 0 : index
      %c0_20 = arith.constant 0 : index
      %23 = vector.load %arg7[%c0_19, %c0_20] : memref<1x128xf32, #tpu.memory_space<vmem>>, vector<1x128xf32>
      tpu.vector_store %arg7[%c0_19, %c0_20], %22 {strides = array<i32>} : memref<1x128xf32, #tpu.memory_space<vmem>>, vector<1x128xf32>,
    } else {
    }
    %c0 = arith.constant 0 : index
    %c0_1 = arith.constant 0 : index
    %3 = vector.load %arg2[%c0, %c0_1] : memref<16x128xf32, #tpu.memory_space<vmem>>, vector<16x128xf32>
    %c0_2 = arith.constant 0 : index
    %c0_3 = arith.constant 0 : index
    %4 = vector.load %arg3[%c0_2, %c0_3] : memref<16x128xf32, #tpu.memory_space<vmem>>, vector<16x128xf32>
    %c0_4 = arith.constant 0 : index
    %c0_5 = arith.constant 0 : index
    %5 = vector.load %arg6[%c0_4, %c0_5] : memref<1x128xf32, #tpu.memory_space<vmem>>, vector<1x128xf32>
    %6 = arith.mulf %3, %4 : vector<16x128xf32>
    %cst = arith.constant dense<0.000000e+00> : vector<128xf32>
    %7 = vector.multi_reduction <add>, %6, %cst [0] : vector<16x128xf32> to vector<128xf32>
    %8 = vector.shape_cast %7 : vector<128xf32> to vector<1x128xf32>
    %9 = arith.addf %5, %8 : vector<1x128xf32>
    %c0_6 = arith.constant 0 : index
    %c0_7 = arith.constant 0 : index
    %10 = vector.load %arg6[%c0_6, %c0_7] : memref<1x128xf32, #tpu.memory_space<vmem>>, vector<1x128xf32>
    tpu.vector_store %arg6[%c0_6, %c0_7], %9 {strides = array<i32>} : memref<1x128xf32, #tpu.memory_space<vmem>>, vector<1x128xf32>,
    %c0_8 = arith.constant 0 : index
    %c0_9 = arith.constant 0 : index
    %11 = vector.load %arg7[%c0_8, %c0_9] : memref<1x128xf32, #tpu.memory_space<vmem>>, vector<1x128xf32>
    %12 = arith.addf %3, %4 : vector<16x128xf32>
    %cst_10 = arith.constant dense<0.000000e+00> : vector<128xf32>
    %13 = vector.multi_reduction <add>, %12, %cst_10 [0] : vector<16x128xf32> to vector<128xf32>
    %14 = vector.shape_cast %13 : vector<128xf32> to vector<1x128xf32>
    %15 = arith.addf %11, %14 : vector<1x128xf32>
    %c0_11 = arith.constant 0 : index
    %c0_12 = arith.constant 0 : index
    %16 = vector.load %arg7[%c0_11, %c0_12] : memref<1x128xf32, #tpu.memory_space<vmem>>, vector<1x128xf32>
    tpu.vector_store %arg7[%c0_11, %c0_12], %15 {strides = array<i32>} : memref<1x128xf32, #tpu.memory_space<vmem>>, vector<1x128xf32>,
    %c0_i32_13 = arith.constant 0 : i32
    %17 = arith.cmpi eq, %arg1, %c0_i32_13 : i32
    %18 = arith.extui %17 : i1 to i32
    %c0_i32_14 = arith.constant 0 : i32
    %19 = arith.cmpi ne, %18, %c0_i32_14 : i32
    scf.if %19 {
      %c0_15 = arith.constant 0 : index
      %c0_16 = arith.constant 0 : index
      %20 = vector.load %arg6[%c0_15, %c0_16] : memref<1x128xf32, #tpu.memory_space<vmem>>, vector<1x128xf32>
      %c0_17 = arith.constant 0 : index
      %c0_18 = arith.constant 0 : index
      %c0_19 = arith.constant 0 : index
      %21 = vector.load %arg4[%c0_17, %c0_18, %c0_19] : memref<1x1x128xf32, #tpu.memory_space<vmem>>, vector<1x1x128xf32>
      %22 = vector.shape_cast %21 : vector<1x1x128xf32> to vector<1x128xf32>
      %23 = vector.shape_cast %20 : vector<1x128xf32> to vector<1x1x128xf32>
      tpu.vector_store %arg4[%c0_17, %c0_18, %c0_19], %23 {strides = array<i32>} : memref<1x1x128xf32, #tpu.memory_space<vmem>>, vector<1x1x128xf32>,
      %c0_20 = arith.constant 0 : index
      %c0_21 = arith.constant 0 : index
      %24 = vector.load %arg7[%c0_20, %c0_21] : memref<1x128xf32, #tpu.memory_space<vmem>>, vector<1x128xf32>
      %c0_22 = arith.constant 0 : index
      %c0_23 = arith.constant 0 : index
      %c0_24 = arith.constant 0 : index
      %25 = vector.load %arg5[%c0_22, %c0_23, %c0_24] : memref<1x1x128xf32, #tpu.memory_space<vmem>>, vector<1x1x128xf32>
      %26 = vector.shape_cast %25 : vector<1x1x128xf32> to vector<1x128xf32>
      %27 = vector.shape_cast %24 : vector<1x128xf32> to vector<1x1x128xf32>
      tpu.vector_store %arg5[%c0_22, %c0_23, %c0_24], %27 {strides = array<i32>} : memref<1x1x128xf32, #tpu.memory_space<vmem>>, vector<1x1x128xf32>,
    } else {
    }
    return
  }
  func.func @transform_0(%arg0: i32, %arg1: i32) -> (i32, i32) {
    %c1_i32 = arith.constant 1 : i32
    %0 = arith.muli %arg0, %c1_i32 : i32
    %1 = arith.addi %0, %arg1 : i32
    %c0_i32 = arith.constant 0 : i32
    %c0_i32_0 = arith.constant 0 : i32
    return %1, %c0_i32 : i32, i32
  }
  func.func @transform_1(%arg0: i32, %arg1: i32) -> (i32, i32) {
    %c1_i32 = arith.constant 1 : i32
    %0 = arith.muli %arg0, %c1_i32 : i32
    %1 = arith.addi %0, %arg1 : i32
    %c0_i32 = arith.constant 0 : i32
    %c0_i32_0 = arith.constant 0 : i32
    return %1, %c0_i32 : i32, i32
  }
  func.func @transform_2(%arg0: i32, %arg1: i32) -> (i32, i32, i32) {
    %c0_i32 = arith.constant 0 : i32
    %c0_i32_0 = arith.constant 0 : i32
    %c0_i32_1 = arith.constant 0 : i32
    return %arg0, %c0_i32, %c0_i32_0 : i32, i32, i32
  }
  func.func @transform_3(%arg0: i32, %arg1: i32) -> (i32, i32, i32) {
    %c0_i32 = arith.constant 0 : i32
    %c0_i32_0 = arith.constant 0 : i32
    %c0_i32_1 = arith.constant 0 : i32
    return %arg0, %c0_i32, %c0_i32_0 : i32, i32, i32
  }
}

</mosaic_0001>

<llo_original>
// kernel: tpu_custom_call.1
$region0: #{tpu_custom_call.1}
  #allocation0 [shape = 'u32[]', space=smem, size = 0x4, offset = 0x4, fixed_abs, tag = 'smem constant byte address 0x4 - core index']
  #allocation1 [shape = 'u32[72,128]{1,0:T(1,128)}', space=vmem, size = 0x9000, scoped, tag = 'internal scratch']
  #allocation2 [shape = 'f32[1,128]{1,0:T(1,128)}', space=vmem, size = 0x200, scoped, tag = 'scratch operand']
  #allocation3 [shape = 'f32[1,128]{1,0:T(1,128)}', space=vmem, size = 0x200, scoped, tag = 'scratch operand']
  %s0 = inlined_call_operand.hbm [shape: f32[16,128], index: 0, kind: input, shape index: {}]
  %s1 = inlined_call_operand.hbm [shape: f32[16,128], index: 1, kind: input, shape index: {}]
  %s2 = inlined_call_operand.hbm [shape: f32[1,1,128], index: 2, kind: output, shape index: {0}]
  %s3 = inlined_call_operand.hbm [shape: f32[1,1,128], index: 3, kind: output, shape index: {1}]
  %4 = xla_tuple %s2, %s3
  %s5 = sld [smem:[#allocation0]]
  $region42: #{tpu_custom_call.1} parent=0
    _
  %s7 = ssub.s32 1, %s5
  %s8 = scalar_select 0, %s7, %s5
  $region1: #{tpu_custom_call.1} parent=0
    #allocation4 [shape = 'u8[8192]{0}', space=vmem, size = 0x2000, scoped, tag = 'input window, operand 0, single buffered']
    #allocation5 [shape = 's32[1]{0}', space=sflag, size = 0x4, scoped, tag = 'scoped memory for tpu_custom_call.1']
    #allocation6 [shape = 's32[1]{0}', space=sflag, size = 0x4, scoped, tag = 'scoped memory for tpu_custom_call.1']
    #allocation7 [shape = 'u8[8192]{0}', space=vmem, size = 0x2000, scoped, tag = 'input window, operand 1, single buffered']
    #allocation8 [shape = 's32[1]{0}', space=sflag, size = 0x4, scoped, tag = 'scoped memory for tpu_custom_call.1']
    #allocation9 [shape = 'u8[512]{0}', space=vmem, size = 0x400, scoped, tag = 'output window, operand 0, single buffered']
    #allocation10 [shape = 'u8[512]{0}', space=vmem, size = 0x400, scoped, tag = 'output window, operand 1, single buffered']
    #allocation11 [shape = 's32[1]{0}', space=sflag, size = 0x4, scoped, tag = 'scoped memory for tpu_custom_call.1']
    %9 = vsyncpa [#allocation5], 0
    %10 = vsyncpa [#allocation8], 0
    %11 = vsyncpa [#allocation6], 0
    %12 = vsyncpa [#allocation11], 0
    // Predicated region
    $region2: #{tpu_custom_call.1} parent=1 // pred_check
      _
    $region3: #{tpu_custom_call.1} parent=1 // pred_check_branch
      %14 = sbr.rel (0) target = $region5
    $region4: #{tpu_custom_call.1} parent=1 // pred_region
      %s15 = sadd.s32 0, 0
      %s16 = smul.u32 2, %s15
      %18 = vsyncadd [#allocation5], 0
      %s19 = smul.addr %s16, 8
      %s20 = scalar_lea.hbm %s0, %s19
      %s21 = sshll.u32 %s20, 4
      %s22 = int_to_ptr.hbm [resolvable:$true] %s21
      %s23 = sshll.u32 [#allocation4], 4
      %s24 = int_to_ptr.vmem [resolvable:$true] %s23
      %29 = dma.hbm_to_vmem [thread:$0]  %s22, 256, %s24, [#allocation5], 128, 128, 8
    $region5: #{tpu_custom_call.1} parent=1 // pred_fallthru
      _
    // Predicated region
    $region6: #{tpu_custom_call.1} parent=1 // pred_check
      _
    $region7: #{tpu_custom_call.1} parent=1 // pred_check_branch
      %31 = sbr.rel (0) target = $region9
    $region8: #{tpu_custom_call.1} parent=1 // pred_region
      %s32 = sadd.s32 0, 0
      %s33 = smul.u32 2, %s32
      %35 = vsyncadd [#allocation8], 0
      %s36 = smul.addr %s33, 8
      %s37 = scalar_lea.hbm %s1, %s36
      %s38 = sshll.u32 %s37, 4
      %s39 = int_to_ptr.hbm [resolvable:$true] %s38
      %s40 = sshll.u32 [#allocation7], 4
      %s41 = int_to_ptr.vmem [resolvable:$true] %s40
      %46 = dma.hbm_to_vmem [thread:$0]  %s39, 256, %s41, [#allocation8], 128, 128, 8
    $region9: #{tpu_custom_call.1} parent=1 // pred_fallthru
      _
    // Predicated region
    $region10: #{tpu_custom_call.1} parent=1 // pred_check
      _
    $region11: #{tpu_custom_call.1} parent=1 // pred_check_branch
      %48 = sbr.rel (0) target = $region13
    $region12: #{tpu_custom_call.1} parent=1 // pred_region
      %50 = dma.done [#allocation5], 256
    $region13: #{tpu_custom_call.1} parent=1 // pred_fallthru
      _
    // Predicated region
    $region14: #{tpu_custom_call.1} parent=1 // pred_check
      _
    $region15: #{tpu_custom_call.1} parent=1 // pred_check_branch
      %52 = sbr.rel (0) target = $region17
    $region16: #{tpu_custom_call.1} parent=1 // pred_region
      %54 = dma.done [#allocation8], 256
    $region17: #{tpu_custom_call.1} parent=1 // pred_fallthru
      _
    %s55 = sadd.s32 0, 0
    %s56 = smul.u32 2, %s55
    %s57 = sadd.s32 0, 0
    %s58 = smul.u32 2, %s57
    %p59 = scmp.eq.s32.totalorder 0, 0
    // Predicated region
    $region18: #{tpu_custom_call.1} parent=1 // pred_check
      %p60 = pneg %p59
    $region19: #{tpu_custom_call.1} parent=1 // pred_check_branch
      %62 = sbr.rel (%p60) target = $region21
    $region20: #{tpu_custom_call.1} parent=1 // pred_region
      %63 = vst [vmem:[#allocation2] sm:$0x1] 0.0
      %64 = vst [vmem:[#allocation3] sm:$0x1] 0.0
    $region21: #{tpu_custom_call.1} parent=1 // pred_fallthru
      _
    %v65 = vld [vmem:[#allocation4] sm:$0xff]
    %v66 = vld [vmem:[#allocation4 + $0x8] sm:$0xff]
    %v67 = vld [vmem:[#allocation7] sm:$0xff]
    %v68 = vld [vmem:[#allocation7 + $0x8] sm:$0xff]
    %v69 = vld [vmem:[#allocation2] sm:$0x1]
    %v70 = vmul.f32 %v65, %v67
    %v71 = vmul.f32 %v66, %v68
    %v72 = vadd.f32 %v70, %v71
    %v73 = vrot.slane %v72, 4
    %v74 = vadd.f32 %v72, %v73
    %v75 = vrot.slane %v74, 2
    %v76 = vadd.f32 %v74, %v75
    %v77 = vrot.slane %v76, 1
    %v78 = vadd.f32 %v76, %v77
    %v79 = vadd.f32 %v69, %v78
    %80 = vst [vmem:[#allocation2] sm:$0x1] %v79
    %v81 = vld [vmem:[#allocation3] sm:$0x1]
    %v82 = vadd.f32 %v65, %v67
    %v83 = vadd.f32 %v66, %v68
    %v84 = vadd.f32 %v82, %v83
    %v85 = vrot.slane %v84, 4
    %v86 = vadd.f32 %v84, %v85
    %v87 = vrot.slane %v86, 2
    %v88 = vadd.f32 %v86, %v87
    %v89 = vrot.slane %v88, 1
    %v90 = vadd.f32 %v88, %v89
    %v91 = vadd.f32 %v81, %v90
    %92 = vst [vmem:[#allocation3] sm:$0x1] %v91
    // Predicated region
    $region22: #{tpu_custom_call.1} parent=1 // pred_check
      %p93 = pneg %p59
    $region23: #{tpu_custom_call.1} parent=1 // pred_check_branch
      %95 = sbr.rel (%p93) target = $region25
    $region24: #{tpu_custom_call.1} parent=1 // pred_region
      %v96 = vld [vmem:[#allocation2] sm:$0x1]
      %97 = vst [vmem:[#allocation9] sm:$0x1] %v96
      %v98 = vld [vmem:[#allocation3] sm:$0x1]
      %99 = vst [vmem:[#allocation10] sm:$0x1] %v98
    $region25: #{tpu_custom_call.1} parent=1 // pred_fallthru
      _
    // Predicated region
    $region26: #{tpu_custom_call.1} parent=1 // pred_check
      _
    $region27: #{tpu_custom_call.1} parent=1 // pred_check_branch
      %101 = sbr.rel (0) target = $region29
    $region28: #{tpu_custom_call.1} parent=1 // pred_region
      %103 = vsyncadd [#allocation6], 0
      %s105 = sshll.u32 [#allocation9], 4
      %s106 = int_to_ptr.vmem [resolvable:$true] %s105
      %s107 = sshll.u32 %s2, 4
      %s108 = int_to_ptr.hbm [resolvable:$true] %s107
      %110 = dma.vmem_to_hbm [thread:$0]  %s106, 16, %s108, [#allocation6]
    $region29: #{tpu_custom_call.1} parent=1 // pred_fallthru
      _
    // Predicated region
    $region30: #{tpu_custom_call.1} parent=1 // pred_check
      _
    $region31: #{tpu_custom_call.1} parent=1 // pred_check_branch
      %112 = sbr.rel (0) target = $region33
    $region32: #{tpu_custom_call.1} parent=1 // pred_region
      %114 = vsyncadd [#allocation11], 0
      %s116 = sshll.u32 [#allocation10], 4
      %s117 = int_to_ptr.vmem [resolvable:$true] %s116
      %s118 = sshll.u32 %s3, 4
      %s119 = int_to_ptr.hbm [resolvable:$true] %s118
      %121 = dma.vmem_to_hbm [thread:$0]  %s117, 16, %s119, [#allocation11]
    $region33: #{tpu_custom_call.1} parent=1 // pred_fallthru
      _
    // Predicated region
    $region34: #{tpu_custom_call.1} parent=1 // pred_check
      _
    $region35: #{tpu_custom_call.1} parent=1 // pred_check_branch
      %123 = sbr.rel (0) target = $region37
    $region36: #{tpu_custom_call.1} parent=1 // pred_region
      %125 = dma.done [#allocation6], 16
    $region37: #{tpu_custom_call.1} parent=1 // pred_fallthru
      _
    // Predicated region
    $region38: #{tpu_custom_call.1} parent=1 // pred_check
      _
    $region39: #{tpu_custom_call.1} parent=1 // pred_check_branch
      %127 = sbr.rel (0) target = $region41
    $region40: #{tpu_custom_call.1} parent=1 // pred_region
      %129 = dma.done [#allocation11], 16
    $region41: #{tpu_custom_call.1} parent=1 // pred_fallthru
      _
    %130 = vsyncpa [#allocation5], 1
    %131 = vsyncpa [#allocation8], 1
    %132 = vsyncpa [#allocation6], 1
    %133 = vsyncpa [#allocation11], 1

</llo_original>
